<compile_context>
chip_gen: v5e
topology: v5e:2x2
jax: 0.10.0
libtpu: 0.0.40
codegen_flags: <defaults>
</compile_context>

<pallas_src>
import functools

import jax
import jax.numpy as jnp
from jax.experimental import pallas as pl
from jax.experimental.pallas import tpu as pltpu


def _round_up(n, m):
    return ((n + m - 1) // m) * m


# ---------------------------------------------------------------------------
# Kernel: packed layout.  x tile: [tile_rows, pack*Dp] (each row = `pack`
# samples side by side, lane-dense).  Weights are block-diagonal (pack copies
# of the folded W^T), so each packed row is processed independently:
#   h1 = relu(x @ W1_bd + b1_bd)   [tile_rows, pack*32]
#   h2 = relu(h1 @ W2_bd + b2_bd)  [tile_rows, pack*16]
#   o  = h2 @ W3_bd + b3_bd        [tile_rows, pack]
# ---------------------------------------------------------------------------
def _mlp_kernel(x_ref, w_ref, b_ref, o_ref, *, k1, n1, k2, n2, k3, n3):
    x = x_ref[...]                                              # [TR, k1]

    w1 = w_ref[0:k1, 0:n1]                                      # [k1, n1]
    h1 = jnp.dot(x, w1, preferred_element_type=jnp.float32)
    h1 = jnp.maximum(h1 + b_ref[0:1, 0:n1], 0.0)                # [TR, n1]

    w2 = w_ref[k1:k1 + k2, 0:n2]                                # [k2, n2]
    h2 = jnp.dot(h1, w2, preferred_element_type=jnp.float32)
    h2 = jnp.maximum(h2 + b_ref[1:2, 0:n2], 0.0)                # [TR, n2]

    w3 = w_ref[k1 + k2:k1 + k2 + k3, 0:n3]                      # [k3, n3]
    out = jnp.dot(h2, w3, preferred_element_type=jnp.float32)
    o_ref[...] = out + b_ref[2:3, 0:n3]                         # [TR, n3]


# ---------------------------------------------------------------------------
# Wrapper: natural [batch, D] input, free reshape to packed layout, batch-tiled.
# ---------------------------------------------------------------------------
@functools.partial(jax.jit, static_argnames=("pack", "tile_b"))
def bike_volume_nn_forward(x, wslab, bslab, pack, tile_b=None):
    """x: [batch, input_dim] f32.  Returns [batch, 1] f32."""
    batch, d = x.shape
    h1_dim, h2_dim = 32, 16
    n1, n2, n3 = pack * h1_dim, pack * h2_dim, pack
    k2, k3 = n1, n2
    k1 = wslab.shape[0] - k2 - k3
    dp = k1 // pack                      # padded feature width (pack*dp == lanes)

    # Pad batch to a multiple of `pack` (and features to dp) so [batch, d] can
    # be reshaped -- not transposed/copied -- into [batch/pack, pack*dp].
    pb = _round_up(max(batch, 1), pack)
    rows = pb // pack
    if rows < 8:                         # keep the block within the array
        pb = 8 * pack
        rows = 8
    if pb != batch or dp != d:
        x = jnp.pad(x, ((0, pb - batch), (0, dp - d)))
    x_p = x.reshape(rows, pack * dp)     # contiguous row-major => free reshape

    # Tile size in packed rows (multiple of 8).  Default targets a ~2 MiB x
    # tile (DMA >> 0.35us step overhead) while keeping >= ~8 grid steps on
    # large batches (v7x megacore) and staying far inside v7x's 64 MiB VMEM.
    bytes_per_row = pack * dp * 4
    if tile_b is None:
        cap_rows = max(8, ((2 * 1024 * 1024) // bytes_per_row) // 8 * 8)
        want_rows = max(8, _round_up(pl.cdiv(rows, 8), 8))
        tile_rows = min(cap_rows, want_rows)
    else:
        tile_rows = max(8, _round_up(tile_b, 8 * pack) // pack)
    tile_rows = min(tile_rows, (rows // 8) * 8)   # block never exceeds array
    num_tiles = pl.cdiv(rows, tile_rows)

    kernel = functools.partial(_mlp_kernel, k1=k1, n1=n1, k2=k2, n2=n2,
                               k3=k3, n3=n3)
    const = lambda i: (0, 0)             # param slabs: resident across steps

    out_p = pl.pallas_call(
        kernel,
        out_shape=jax.ShapeDtypeStruct((rows, pack), jnp.float32),
        grid=(num_tiles,),
        in_specs=[
            pl.BlockSpec((tile_rows, pack * dp), lambda i: (i, 0)),  # packed x
            pl.BlockSpec(wslab.shape, const),                        # weights
            pl.BlockSpec(bslab.shape, const),                        # biases
        ],
        out_specs=pl.BlockSpec((tile_rows, pack), lambda i: (i, 0)),
        compiler_params=pltpu.CompilerParams(
            dimension_semantics=("parallel",),
            vmem_limit_bytes=48 * 1024 * 1024,
        ),
    )(x_p, wslab, bslab)

    # Packed [rows, pack] -> [pb, 1]; drop padded tail samples.
    return out_p.reshape(pb, 1)[:batch]


# ---------------------------------------------------------------------------
# Parameters (PyTorch layout), eval-mode BN folding, and packed-slab prep.
# ---------------------------------------------------------------------------
def init_params(key, input_dim):
    """Deterministic params matching the 2-layer BikeVolumeNN shapes."""
    ks = jax.random.split(key, 10)

    def linear(kw, kb, fan_in, fan_out):
        bound = 1.0 / jnp.sqrt(float(fan_in))
        w = jax.random.uniform(kw, (fan_out, fan_in), jnp.float32, -bound, bound)
        b = jax.random.uniform(kb, (fan_out,), jnp.float32, -bound, bound)
        return w, b

    w1, b1 = linear(ks[0], ks[1], input_dim, 32)
    w2, b2 = linear(ks[2], ks[3], 32, 16)
    w3, b3 = linear(ks[4], ks[5], 16, 1)

    def bn(kg, kb, n):
        gamma = 1.0 + 0.1 * jax.random.normal(kg, (n,), jnp.float32)
        beta = 0.1 * jax.random.normal(kb, (n,), jnp.float32)
        return gamma, beta, jnp.zeros((n,), jnp.float32), jnp.ones((n,), jnp.float32)

    g1, be1, rm1, rv1 = bn(ks[6], ks[7], 32)
    g2, be2, rm2, rv2 = bn(ks[8], ks[9], 16)

    return {
        "w1": w1, "b1": b1, "gamma1": g1, "beta1": be1, "rm1": rm1, "rv1": rv1,
        "w2": w2, "b2": b2, "gamma2": g2, "beta2": be2, "rm2": rm2, "rv2": rv2,
        "w3": w3, "b3": b3,
    }


def fold_params(p, eps=1e-5):
    """Fold eval-mode BatchNorm into the preceding Linear (exact in eval mode)."""
    s1 = p["gamma1"] / jnp.sqrt(p["rv1"] + eps)
    t1 = p["beta1"] - p["rm1"] * s1
    s2 = p["gamma2"] / jnp.sqrt(p["rv2"] + eps)
    t2 = p["beta2"] - p["rm2"] * s2
    return {
        "w1": p["w1"] * s1[:, None], "b1": p["b1"] * s1 + t1,   # [32,D], [32]
        "w2": p["w2"] * s2[:, None], "b2": p["b2"] * s2 + t2,   # [16,32], [16]
        "w3": p["w3"],               "b3": p["b3"],             # [1,16],  [1]
    }


def pack_params(folded, input_dim, h1=32, h2=16):
    """Build block-diagonal packed weight/bias slabs for the lane-dense layout."""
    d = input_dim
    if d <= 128:
        dp = 1 << max(0, (d - 1).bit_length())   # next pow2 >= d
        pack = 128 // dp                         # samples per 128-lane row
    else:
        dp = _round_up(d, 128)
        pack = 1

    w1t = jnp.zeros((dp, h1), jnp.float32).at[:d, :].set(folded["w1"].T)
    w2t = folded["w2"].T.astype(jnp.float32)     # [h1, h2]
    w3t = folded["w3"].T.astype(jnp.float32)     # [h2, 1]

    def bdiag(w):                                # pack copies of w on the diagonal
        k, n = w.shape
        eye = jnp.eye(pack, dtype=w.dtype)
        return jnp.einsum("pq,kn->pkqn", eye, w).reshape(pack * k, pack * n)

    w1b, w2b, w3b = bdiag(w1t), bdiag(w2t), bdiag(w3t)
    (k1, n1), (k2, n2), (k3, n3) = w1b.shape, w2b.shape, w3b.shape
    width = max(n1, n2, n3)

    wslab = jnp.zeros((k1 + k2 + k3, width), jnp.float32)
    wslab = wslab.at[:k1, :n1].set(w1b)
    wslab = wslab.at[k1:k1 + k2, :n2].set(w2b)
    wslab = wslab.at[k1 + k2:, :n3].set(w3b)

    bslab = jnp.zeros((3, width), jnp.float32)
    bslab = bslab.at[0, :n1].set(jnp.tile(folded["b1"], pack))
    bslab = bslab.at[1, :n2].set(jnp.tile(folded["b2"], pack))
    bslab = bslab.at[2, :n3].set(jnp.tile(folded["b3"], pack))
    return wslab, bslab, pack


def _reference_forward(x, p, eps=1e-5):
    """Plain-JAX eval-mode reference (un-folded BN), x: [batch, D]."""
    h = x @ p["w1"].T + p["b1"]
    h = (h - p["rm1"]) / jnp.sqrt(p["rv1"] + eps) * p["gamma1"] + p["beta1"]
    h = jnp.maximum(h, 0.0)
    h = h @ p["w2"].T + p["b2"]
    h = (h - p["rm2"]) / jnp.sqrt(p["rv2"] + eps) * p["gamma2"] + p["beta2"]
    h = jnp.maximum(h, 0.0)
    return h @ p["w3"].T + p["b3"]


if __name__ == "__main__":
    key = jax.random.PRNGKey(0)
    k_x, k_x2, k_p = jax.random.split(key, 3)

    input_dim = 16
    params = init_params(k_p, input_dim)
    folded = fold_params(params)
    wslab, bslab, pack = pack_params(folded, input_dim)

    # Small single-tile check.
    batch = 8
    x = jax.random.normal(k_x, (batch, input_dim), jnp.float32)
    out = jax.block_until_ready(bike_volume_nn_forward(x, wslab, bslab, pack))
    ref = _reference_forward(x, params)
    assert out.shape == (batch, 1), out.shape
    assert jnp.allclose(out, ref, atol=1e-4, rtol=1e-4)

    # Multi-tile check with a ragged (partial) last block and explicit tile_b.
    batch2 = 300
    x2 = jax.random.normal(k_x2, (batch2, input_dim), jnp.float32)
    out2 = jax.block_until_ready(
        bike_volume_nn_forward(x2, wslab, bslab, pack, tile_b=128))
    ref2 = _reference_forward(x2, params)
    assert out2.shape == (batch2, 1), out2.shape
    assert jnp.allclose(out2, ref2, atol=1e-4, rtol=1e-4)

    print("KERNEL_OK")
</pallas_src>

<mosaic_0001>
module attributes {stable_mosaic.version = 11 : i64} {
  func.func @_mlp_kernel(%arg0: i32, %arg1: memref<8x128xf32, #tpu.memory_space<vmem>>, %arg2: memref<512x256xf32, #tpu.memory_space<vmem>>, %arg3: memref<3x256xf32, #tpu.memory_space<vmem>>, %arg4: memref<8x8xf32, #tpu.memory_space<vmem>>) attributes {dimension_semantics = [#tpu.dimension_semantics<parallel>], iteration_bounds = array<i64: 1>, scalar_prefetch = 0 : i64, scratch_operands = 0 : i64, tpu.core_type = #tpu.core_type<tc>, window_params = [{transform_indices = @transform_0, window_bounds = array<i64: 8, 128>}, {pipeline_mode = #tpu.pipeline_mode<synchronous>, transform_indices = @transform_1, window_bounds = array<i64: 512, 256>}, {pipeline_mode = #tpu.pipeline_mode<synchronous>, transform_indices = @transform_2, window_bounds = array<i64: 3, 256>}, {transform_indices = @transform_3, window_bounds = array<i64: 8, 8>}]} {
    %c0 = arith.constant 0 : index
    %c0_0 = arith.constant 0 : index
    %0 = vector.load %arg1[%c0, %c0_0] : memref<8x128xf32, #tpu.memory_space<vmem>>, vector<8x128xf32>
    %c0_1 = arith.constant 0 : index
    %c0_2 = arith.constant 0 : index
    %1 = vector.load %arg2[%c0_1, %c0_2] : memref<512x256xf32, #tpu.memory_space<vmem>>, vector<128x256xf32>
    %cst = arith.constant dense<0.000000e+00> : vector<8x256xf32>
    %2 = tpu.matmul %0, %1, %cst {dimension_numbers = #tpu.dot_dimension_numbers<[1], [0], [0], [1], [0, 0, 1, 1], [], []>} : vector<8x128xf32>, vector<128x256xf32>, vector<8x256xf32> -> vector<8x256xf32>
    %c0_3 = arith.constant 0 : index
    %c0_4 = arith.constant 0 : index
    %3 = vector.load %arg3[%c0_3, %c0_4] : memref<3x256xf32, #tpu.memory_space<vmem>>, vector<1x256xf32>
    %4 = vector.broadcast %3 : vector<1x256xf32> to vector<8x256xf32>
    %5 = arith.addf %2, %4 : vector<8x256xf32>
    %cst_5 = arith.constant 0.000000e+00 : f32
    %6 = vector.broadcast %cst_5 : f32 to vector<8x256xf32>
    %7 = arith.maximumf %5, %6 : vector<8x256xf32>
    %c128 = arith.constant 128 : index
    %c0_6 = arith.constant 0 : index
    %8 = vector.load %arg2[%c128, %c0_6] : memref<512x256xf32, #tpu.memory_space<vmem>>, vector<256x128xf32>
    %cst_7 = arith.constant dense<0.000000e+00> : vector<8x128xf32>
    %9 = tpu.matmul %7, %8, %cst_7 {dimension_numbers = #tpu.dot_dimension_numbers<[1], [0], [0], [1], [0, 0, 1, 1], [], []>} : vector<8x256xf32>, vector<256x128xf32>, vector<8x128xf32> -> vector<8x128xf32>
    %c1 = arith.constant 1 : index
    %c0_8 = arith.constant 0 : index
    %10 = vector.load %arg3[%c1, %c0_8] : memref<3x256xf32, #tpu.memory_space<vmem>>, vector<1x128xf32>
    %11 = vector.broadcast %10 : vector<1x128xf32> to vector<8x128xf32>
    %12 = arith.addf %9, %11 : vector<8x128xf32>
    %cst_9 = arith.constant 0.000000e+00 : f32
    %13 = vector.broadcast %cst_9 : f32 to vector<8x128xf32>
    %14 = arith.maximumf %12, %13 : vector<8x128xf32>
    %c384 = arith.constant 384 : index
    %c0_10 = arith.constant 0 : index
    %15 = vector.load %arg2[%c384, %c0_10] : memref<512x256xf32, #tpu.memory_space<vmem>>, vector<128x8xf32>
    %cst_11 = arith.constant dense<0.000000e+00> : vector<8x8xf32>
    %16 = tpu.matmul %14, %15, %cst_11 {dimension_numbers = #tpu.dot_dimension_numbers<[1], [0], [0], [1], [0, 0, 1, 1], [], []>} : vector<8x128xf32>, vector<128x8xf32>, vector<8x8xf32> -> vector<8x8xf32>
    %c2 = arith.constant 2 : index
    %c0_12 = arith.constant 0 : index
    %17 = vector.load %arg3[%c2, %c0_12] : memref<3x256xf32, #tpu.memory_space<vmem>>, vector<1x8xf32>
    %18 = vector.broadcast %17 : vector<1x8xf32> to vector<8x8xf32>
    %19 = arith.addf %16, %18 : vector<8x8xf32>
    %c0_13 = arith.constant 0 : index
    %c0_14 = arith.constant 0 : index
    %20 = vector.load %arg4[%c0_13, %c0_14] : memref<8x8xf32, #tpu.memory_space<vmem>>, vector<8x8xf32>
    tpu.vector_store %arg4[%c0_13, %c0_14], %19 {strides = array<i32>} : memref<8x8xf32, #tpu.memory_space<vmem>>, vector<8x8xf32>,
    return
  }
  func.func @transform_0(%arg0: i32) -> (i32, i32) {
    %c0_i32 = arith.constant 0 : i32
    %c0_i32_0 = arith.constant 0 : i32
    return %arg0, %c0_i32 : i32, i32
  }
  func.func @transform_1(%arg0: i32) -> (i32, i32) {
    %c0_i32 = arith.constant 0 : i32
    %c0_i32_0 = arith.constant 0 : i32
    %c0_i32_1 = arith.constant 0 : i32
    return %c0_i32, %c0_i32_0 : i32, i32
  }
  func.func @transform_2(%arg0: i32) -> (i32, i32) {
    %c0_i32 = arith.constant 0 : i32
    %c0_i32_0 = arith.constant 0 : i32
    %c0_i32_1 = arith.constant 0 : i32
    return %c0_i32, %c0_i32_0 : i32, i32
  }
  func.func @transform_3(%arg0: i32) -> (i32, i32) {
    %c0_i32 = arith.constant 0 : i32
    %c0_i32_0 = arith.constant 0 : i32
    return %arg0, %c0_i32 : i32, i32
  }
}

</mosaic_0001>

<llo_original>
// kernel: bike_volume_nn_forward.1
$region0: #{bike_volume_nn_forward.1}
  #allocation0 [shape = 'u32[]', space=smem, size = 0x4, offset = 0x4, fixed_abs, tag = 'smem constant byte address 0x4 - core index']
  #allocation1 [shape = 'u32[72,128]{1,0:T(1,128)}', space=vmem, size = 0x9000, scoped, tag = 'internal scratch']
  %s0 = inlined_call_operand.vmem [shape: f32[8,128], index: 0, kind: input, shape index: {}]
  %s1 = inlined_call_operand.hbm [shape: f32[512,256], index: 1, kind: input, shape index: {}]
  %s2 = inlined_call_operand.vmem [shape: f32[3,256], index: 2, kind: input, shape index: {}]
  %s3 = inlined_call_operand.vmem [shape: f32[8,8], index: 3, kind: output, shape index: {}]
  %s4 = sld [smem:[#allocation0]]
  $region26: #{bike_volume_nn_forward.1} parent=0
    _
  %s6 = ssub.s32 1, %s4
  %s7 = scalar_select 0, %s6, %s4
  $region1: #{bike_volume_nn_forward.1} parent=0
    #allocation2 [shape = 'u8[524288]{0}', space=vmem, size = 0x80000, scoped, tag = 'input window, operand 1, single buffered']
    #allocation3 [shape = 's32[1]{0}', space=sflag, size = 0x4, scoped, tag = 'scoped memory for bike_volume_nn_forward.1']
    %8 = vsyncpa [#allocation3], 0
    // Predicated region
    $region2: #{bike_volume_nn_forward.1} parent=1 // pred_check
      _
    $region3: #{bike_volume_nn_forward.1} parent=1 // pred_check_branch
      %10 = sbr.rel (0) target = $region5
    $region4: #{bike_volume_nn_forward.1} parent=1 // pred_region
      _
    $region5: #{bike_volume_nn_forward.1} parent=1 // pred_fallthru
      _
    // Predicated region
    $region6: #{bike_volume_nn_forward.1} parent=1 // pred_check
      _
    $region7: #{bike_volume_nn_forward.1} parent=1 // pred_check_branch
      %12 = sbr.rel (0) target = $region9
    $region8: #{bike_volume_nn_forward.1} parent=1 // pred_region
      %14 = vsyncadd [#allocation3], 0
      %s15 = sshll.u32 %s1, 4
      %s16 = int_to_ptr.hbm [resolvable:$true] %s15
      %s17 = sshll.u32 [#allocation2], 4
      %s18 = int_to_ptr.vmem [resolvable:$true] %s17
      %23 = dma.hbm_to_vmem [thread:$0]  %s16, 16384, %s18, [#allocation3], 256, 256, 16
    $region9: #{bike_volume_nn_forward.1} parent=1 // pred_fallthru
      _
    // Predicated region
    $region10: #{bike_volume_nn_forward.1} parent=1 // pred_check
      _
    $region11: #{bike_volume_nn_forward.1} parent=1 // pred_check_branch
      %25 = sbr.rel (0) target = $region13
    $region12: #{bike_volume_nn_forward.1} parent=1 // pred_region
      _
    $region13: #{bike_volume_nn_forward.1} parent=1 // pred_fallthru
      _
    // Predicated region
    $region14: #{bike_volume_nn_forward.1} parent=1 // pred_check
      _
    $region15: #{bike_volume_nn_forward.1} parent=1 // pred_check_branch
      %27 = sbr.rel (0) target = $region17
    $region16: #{bike_volume_nn_forward.1} parent=1 // pred_region
      %29 = dma.done [#allocation3], 16384
    $region17: #{bike_volume_nn_forward.1} parent=1 // pred_fallthru
      _
    %v30 = vld [vmem:[%s0] sm:$0xff]
    %v31 = vld [vmem:[#allocation2] sm:$0xff]
    %v32 = vld [vmem:[#allocation2 + $0x8] sm:$0xff]
    %v33 = vld [vmem:[#allocation2 + $0x10] sm:$0xff]
    %v34 = vld [vmem:[#allocation2 + $0x18] sm:$0xff]
    %v35 = vld [vmem:[#allocation2 + $0x20] sm:$0xff]
    %v36 = vld [vmem:[#allocation2 + $0x28] sm:$0xff]
    %v37 = vld [vmem:[#allocation2 + $0x30] sm:$0xff]
    %v38 = vld [vmem:[#allocation2 + $0x38] sm:$0xff]
    %v39 = vld [vmem:[#allocation2 + $0x40] sm:$0xff]
    %v40 = vld [vmem:[#allocation2 + $0x48] sm:$0xff]
    %v41 = vld [vmem:[#allocation2 + $0x50] sm:$0xff]
    %v42 = vld [vmem:[#allocation2 + $0x58] sm:$0xff]
    %v43 = vld [vmem:[#allocation2 + $0x60] sm:$0xff]
    %v44 = vld [vmem:[#allocation2 + $0x68] sm:$0xff]
    %v45 = vld [vmem:[#allocation2 + $0x70] sm:$0xff]
    %v46 = vld [vmem:[#allocation2 + $0x78] sm:$0xff]
    %v47 = vld [vmem:[#allocation2 + $0x80] sm:$0xff]
    %v48 = vld [vmem:[#allocation2 + $0x88] sm:$0xff]
    %v49 = vld [vmem:[#allocation2 + $0x90] sm:$0xff]
    %v50 = vld [vmem:[#allocation2 + $0x98] sm:$0xff]
    %v51 = vld [vmem:[#allocation2 + $0xa0] sm:$0xff]
    %v52 = vld [vmem:[#allocation2 + $0xa8] sm:$0xff]
    %v53 = vld [vmem:[#allocation2 + $0xb0] sm:$0xff]
    %v54 = vld [vmem:[#allocation2 + $0xb8] sm:$0xff]
    %v55 = vld [vmem:[#allocation2 + $0xc0] sm:$0xff]
    %v56 = vld [vmem:[#allocation2 + $0xc8] sm:$0xff]
    %v57 = vld [vmem:[#allocation2 + $0xd0] sm:$0xff]
    %v58 = vld [vmem:[#allocation2 + $0xd8] sm:$0xff]
    %v59 = vld [vmem:[#allocation2 + $0xe0] sm:$0xff]
    %v60 = vld [vmem:[#allocation2 + $0xe8] sm:$0xff]
    %v61 = vld [vmem:[#allocation2 + $0xf0] sm:$0xff]
    %v62 = vld [vmem:[#allocation2 + $0xf8] sm:$0xff]
    %v63 = vld [vmem:[%s2] ss:$4 sm:$0x3]
    %v65 = vperm.slane %v63, 0
    %v66 = vperm.slane %v63, 1
    %69 = vmatpush.msra.mxu0 %v61
    %70 = vmatpush.msra.mxu0 %v59
    %71 = vmatpush.msra.mxu0 %v57
    %72 = vmatpush.msra.mxu0 %v55
    %73 = vmatpush.msra.mxu0 %v53
    %74 = vmatpush.msra.mxu0 %v51
    %75 = vmatpush.msra.mxu0 %v49
    %76 = vmatpush.msra.mxu0 %v47
    %77 = vmatpush.msra.mxu0 %v45
    %78 = vmatpush.msra.mxu0 %v43
    %79 = vmatpush.msra.mxu0 %v41
    %80 = vmatpush.msra.mxu0 %v39
    %81 = vmatpush.msra.mxu0 %v37
    %82 = vmatpush.msra.mxu0 %v35
    %83 = vmatpush.msra.mxu0 %v33
    %84 = vmatpush.msra.mxu0 %v31
    %85 = vmatmul.f32.gmra.mxu0 %v30
    %v86 = vpop.f32.mrf.mxu0
    %v87 = vadd.f32 %v65, %v86
    %88 = vdwg.mxu0
    %89 = vmatpush.msra.mxu0 %v62
    %90 = vmatpush.msra.mxu0 %v60
    %91 = vmatpush.msra.mxu0 %v58
    %92 = vmatpush.msra.mxu0 %v56
    %93 = vmatpush.msra.mxu0 %v54
    %94 = vmatpush.msra.mxu0 %v52
    %95 = vmatpush.msra.mxu0 %v50
    %96 = vmatpush.msra.mxu0 %v48
    %97 = vmatpush.msra.mxu0 %v46
    %98 = vmatpush.msra.mxu0 %v44
    %99 = vmatpush.msra.mxu0 %v42
    %100 = vmatpush.msra.mxu0 %v40
    %101 = vmatpush.msra.mxu0 %v38
    %102 = vmatpush.msra.mxu0 %v36
    %103 = vmatpush.msra.mxu0 %v34
    %104 = vmatpush.msra.mxu0 %v32
    %105 = vmatmul.f32.gmra.mxu0 %v30
    %v106 = vpop.f32.mrf.mxu0
    %v107 = vadd.f32 %v66, %v106
    %108 = vdwg.mxu0
    %v109 = vmax.f32 %v87, 0.0
    %v110 = vmax.f32 %v107, 0.0
    %v111 = vld [vmem:[#allocation2 + $0x100] sm:$0xff]
    %v112 = vld [vmem:[#allocation2 + $0x110] sm:$0xff]
    %v113 = vld [vmem:[#allocation2 + $0x120] sm:$0xff]
    %v114 = vld [vmem:[#allocation2 + $0x130] sm:$0xff]
    %v115 = vld [vmem:[#allocation2 + $0x140] sm:$0xff]
    %v116 = vld [vmem:[#allocation2 + $0x150] sm:$0xff]
    %v117 = vld [vmem:[#allocation2 + $0x160] sm:$0xff]
    %v118 = vld [vmem:[#allocation2 + $0x170] sm:$0xff]
    %v119 = vld [vmem:[#allocation2 + $0x180] sm:$0xff]
    %v120 = vld [vmem:[#allocation2 + $0x190] sm:$0xff]
    %v121 = vld [vmem:[#allocation2 + $0x1a0] sm:$0xff]
    %v122 = vld [vmem:[#allocation2 + $0x1b0] sm:$0xff]
    %v123 = vld [vmem:[#allocation2 + $0x1c0] sm:$0xff]
    %v124 = vld [vmem:[#allocation2 + $0x1d0] sm:$0xff]
    %v125 = vld [vmem:[#allocation2 + $0x1e0] sm:$0xff]
    %v126 = vld [vmem:[#allocation2 + $0x1f0] sm:$0xff]
    %v127 = vld [vmem:[#allocation2 + $0x200] sm:$0xff]
    %v128 = vld [vmem:[#allocation2 + $0x210] sm:$0xff]
    %v129 = vld [vmem:[#allocation2 + $0x220] sm:$0xff]
    %v130 = vld [vmem:[#allocation2 + $0x230] sm:$0xff]
    %v131 = vld [vmem:[#allocation2 + $0x240] sm:$0xff]
    %v132 = vld [vmem:[#allocation2 + $0x250] sm:$0xff]
    %v133 = vld [vmem:[#allocation2 + $0x260] sm:$0xff]
    %v134 = vld [vmem:[#allocation2 + $0x270] sm:$0xff]
    %v135 = vld [vmem:[#allocation2 + $0x280] sm:$0xff]
    %v136 = vld [vmem:[#allocation2 + $0x290] sm:$0xff]
    %v137 = vld [vmem:[#allocation2 + $0x2a0] sm:$0xff]
    %v138 = vld [vmem:[#allocation2 + $0x2b0] sm:$0xff]
    %v139 = vld [vmem:[#allocation2 + $0x2c0] sm:$0xff]
    %v140 = vld [vmem:[#allocation2 + $0x2d0] sm:$0xff]
    %v141 = vld [vmem:[#allocation2 + $0x2e0] sm:$0xff]
    %v142 = vld [vmem:[#allocation2 + $0x2f0] sm:$0xff]
    %v143 = vld [vmem:[%s2 + $0x1] sm:$0x1]
    %v144 = vperm.slane %v143, 0
    %145 = vmatpush.msra.mxu0 %v126
    %146 = vmatpush.msra.mxu0 %v125
    %147 = vmatpush.msra.mxu0 %v124
    %148 = vmatpush.msra.mxu0 %v123
    %149 = vmatpush.msra.mxu0 %v122
    %150 = vmatpush.msra.mxu0 %v121
    %151 = vmatpush.msra.mxu0 %v120
    %152 = vmatpush.msra.mxu0 %v119
    %153 = vmatpush.msra.mxu0 %v118
    %154 = vmatpush.msra.mxu0 %v117
    %155 = vmatpush.msra.mxu0 %v116
    %156 = vmatpush.msra.mxu0 %v115
    %157 = vmatpush.msra.mxu0 %v114
    %158 = vmatpush.msra.mxu0 %v113
    %159 = vmatpush.msra.mxu0 %v112
    %160 = vmatpush.msra.mxu0 %v111
    %161 = vmatmul.f32.gmra.mxu0 %v109
    %v162 = vpop.f32.mrf.mxu0
    %v163 = vadd.f32 %v144, %v162
    %164 = vdwg.mxu0
    %165 = vmatpush.msra.mxu0 %v142
    %166 = vmatpush.msra.mxu0 %v141
    %167 = vmatpush.msra.mxu0 %v140
    %168 = vmatpush.msra.mxu0 %v139
    %169 = vmatpush.msra.mxu0 %v138
    %170 = vmatpush.msra.mxu0 %v137
    %171 = vmatpush.msra.mxu0 %v136
    %172 = vmatpush.msra.mxu0 %v135
    %173 = vmatpush.msra.mxu0 %v134
    %174 = vmatpush.msra.mxu0 %v133
    %175 = vmatpush.msra.mxu0 %v132
    %176 = vmatpush.msra.mxu0 %v131
    %177 = vmatpush.msra.mxu0 %v130
    %178 = vmatpush.msra.mxu0 %v129
    %179 = vmatpush.msra.mxu0 %v128
    %180 = vmatpush.msra.mxu0 %v127
    %181 = vmatmul.f32.gmra.mxu0 %v110
    %v182 = vpop.f32.mrf.mxu0
    %v183 = vadd.f32 %v163, %v182
    %184 = vdwg.mxu0
    %v185 = vmax.f32 %v183, 0.0
    %v186 = vld [vmem:[#allocation2 + $0x300] sm:$0xff]
    %v187 = vld [vmem:[#allocation2 + $0x310] sm:$0xff]
    %v188 = vld [vmem:[#allocation2 + $0x320] sm:$0xff]
    %v189 = vld [vmem:[#allocation2 + $0x330] sm:$0xff]
    %v190 = vld [vmem:[#allocation2 + $0x340] sm:$0xff]
    %v191 = vld [vmem:[#allocation2 + $0x350] sm:$0xff]
    %v192 = vld [vmem:[#allocation2 + $0x360] sm:$0xff]
    %v193 = vld [vmem:[#allocation2 + $0x370] sm:$0xff]
    %v194 = vld [vmem:[#allocation2 + $0x380] sm:$0xff]
    %v195 = vld [vmem:[#allocation2 + $0x390] sm:$0xff]
    %v196 = vld [vmem:[#allocation2 + $0x3a0] sm:$0xff]
    %v197 = vld [vmem:[#allocation2 + $0x3b0] sm:$0xff]
    %v198 = vld [vmem:[#allocation2 + $0x3c0] sm:$0xff]
    %v199 = vld [vmem:[#allocation2 + $0x3d0] sm:$0xff]
    %v200 = vld [vmem:[#allocation2 + $0x3e0] sm:$0xff]
    %v201 = vld [vmem:[#allocation2 + $0x3f0] sm:$0xff]
    %v202 = vld [vmem:[%s2 + $0x2] sm:$0x1]
    %v203 = vperm.slane %v202, 0
    %204 = vmatpush.msra.mxu0 %v201
    %205 = vmatpush.msra.mxu0 %v200
    %206 = vmatpush.msra.mxu0 %v199
    %207 = vmatpush.msra.mxu0 %v198
    %208 = vmatpush.msra.mxu0 %v197
    %209 = vmatpush.msra.mxu0 %v196
    %210 = vmatpush.msra.mxu0 %v195
    %211 = vmatpush.msra.mxu0 %v194
    %212 = vmatpush.msra.mxu0 %v193
    %213 = vmatpush.msra.mxu0 %v192
    %214 = vmatpush.msra.mxu0 %v191
    %215 = vmatpush.msra.mxu0 %v190
    %216 = vmatpush.msra.mxu0 %v189
    %217 = vmatpush.msra.mxu0 %v188
    %218 = vmatpush.msra.mxu0 %v187
    %219 = vmatpush.msra.mxu0 %v186
    %220 = vmatmul.f32.gmra.mxu0 %v185
    %v221 = vpop.f32.mrf.mxu0
    %v222 = vadd.f32 %v203, %v221
    %223 = vdwg.mxu0
    %vm224 = vcmask 64512
    %225 = vst.msk [vmem:[%s3] sm:$0xff] %vm224, %v222
    // Predicated region
    $region18: #{bike_volume_nn_forward.1} parent=1 // pred_check
      _
    $region19: #{bike_volume_nn_forward.1} parent=1 // pred_check_branch
      %227 = sbr.rel (0) target = $region21
    $region20: #{bike_volume_nn_forward.1} parent=1 // pred_region
      _
    $region21: #{bike_volume_nn_forward.1} parent=1 // pred_fallthru
      _
    // Predicated region
    $region22: #{bike_volume_nn_forward.1} parent=1 // pred_check
      _
    $region23: #{bike_volume_nn_forward.1} parent=1 // pred_check_branch
      %229 = sbr.rel (0) target = $region25
    $region24: #{bike_volume_nn_forward.1} parent=1 // pred_region
      _
    $region25: #{bike_volume_nn_forward.1} parent=1 // pred_fallthru
      _
    %230 = vsyncpa [#allocation3], 1

</llo_original>
